<compile_context>
chip_gen: v5e
topology: v5e:2x2
jax: 0.10.0
libtpu: 0.0.40
codegen_flags: <defaults>
</compile_context>

<pallas_src>
import functools

import jax
import jax.numpy as jnp
from jax import lax
from jax.experimental import pallas as pl
from jax.experimental.pallas import tpu as pltpu

_LANES = 128
_VMEM_LIMIT_CACHE = None


def _vmem_limit():
    """Generation-dependent VMEM cap: ~3/4 of physical, max 96 MiB."""
    global _VMEM_LIMIT_CACHE
    if _VMEM_LIMIT_CACHE is None:
        cap = 128 * 1024 * 1024
        try:
            cap = int(getattr(pltpu.get_tpu_info(), "vmem_capacity_bytes", cap))
        except Exception:
            pass
        _VMEM_LIMIT_CACHE = int(min(max(cap * 3 // 4, 16 * 1024 * 1024),
                                    96 * 1024 * 1024))
    return _VMEM_LIMIT_CACHE


# ----------------------------------------------------------------------------
# Pallas kernels
# ----------------------------------------------------------------------------
def _conv3x3_block_kernel(x_ref, w_ref, b_ref, o_ref, *, th, w_out):
    """TH output rows of a 3x3 conv (pad=1, stride=1) + ReLU, NHWC, bf16 out.

    x_ref: (1, 1, TH+2, W+2, C_in) bf16 overlapping row window of padded input.
    w_ref: (3, 3*C_in, C_out)      bf16 (dh, dw*C_in + c, c_out).
    b_ref: (1, C_out)              f32.
    o_ref: (1, 1, TH, W, C_out)    bf16.
    Per dh a (TH*W, 3*C_in) slab is built and matmul'd once (MXU accumulates
    over K); 3 matmuls total instead of 9, f32 accumulation.
    """
    c_in = x_ref.shape[-1]
    c_out = o_ref.shape[-1]
    x = x_ref[0, 0]                                      # (TH+2, W+2, C_in)
    acc = jnp.zeros((th * w_out, c_out), jnp.float32)
    for dh in range(3):
        rows = x[dh:dh + th]                             # (TH, W+2, C_in)
        slab = jnp.concatenate(
            [rows[:, dw:dw + w_out, :] for dw in range(3)], axis=-1)
        slab = slab.reshape(th * w_out, 3 * c_in)        # (TH*W, 3*C_in)
        acc = acc + jnp.dot(slab, w_ref[dh],
                            preferred_element_type=jnp.float32)
    acc = acc + b_ref[...]                               # (1, C_out) broadcast
    y = jnp.maximum(acc, 0.0).astype(o_ref.dtype)        # ReLU, cast to bf16
    o_ref[0, 0] = y.reshape(th, w_out, c_out)


def _gram_kernel(x_ref, o_ref, acc_ref, *, scale):
    """Per-batch Gram, tiled over HW (grid axis 1, 'arbitrary').

    x_ref:   (1, thw, C) bf16 chunk of the (HW, C) feature map.
    o_ref:   (1, C, C)  f32 output (resident across the HW axis).
    acc_ref: (C, C)     f32 VMEM accumulator scratch.
    """
    @pl.when(pl.program_id(1) == 0)
    def _():
        acc_ref[...] = jnp.zeros_like(acc_ref)

    x = x_ref[0]                                         # (thw, C)
    # Contract the HW axis of x with itself: (thw,C)^T (thw,C) -> (C,C).
    acc_ref[...] += lax.dot_general(
        x, x, dimension_numbers=(((0,), (0,)), ((), ())),
        preferred_element_type=jnp.float32)

    @pl.when(pl.program_id(1) == pl.num_programs(1) - 1)
    def _():
        o_ref[0] = acc_ref[...] * scale


def _l1_kernel(a_ref, b_ref, o_ref, acc_ref, *, inv_count, valid_rows):
    """Tiled mean-|a-b| over (tr, 128) blocks.

    Partials accumulate into an (8, 128) f32 scratch (VALU-only adds per tile);
    the cross-lane/sublane reduction happens once in the finalize.  The ragged
    last block (if any) is masked via a row-index iota (`valid_rows`).
    """
    i = pl.program_id(0)
    tr = a_ref.shape[0]

    @pl.when(i == 0)
    def _():
        acc_ref[...] = jnp.zeros_like(acc_ref)

    d = jnp.abs(a_ref[...].astype(jnp.float32) - b_ref[...].astype(jnp.float32))
    if valid_rows is not None:
        row = i * tr + lax.broadcasted_iota(jnp.int32, d.shape, 0)
        d = jnp.where(row < valid_rows, d, 0.0)
    acc_ref[...] += jnp.sum(d.reshape(tr // 8, 8, _LANES), axis=0)

    @pl.when(i == pl.num_programs(0) - 1)
    def _():
        col = jnp.sum(acc_ref[...], axis=0, keepdims=True)     # (1, 128)
        o_ref[...] = jnp.sum(col, axis=1, keepdims=True) * inv_count


# ----------------------------------------------------------------------------
# Wrappers around pallas_call
# ----------------------------------------------------------------------------
def _pick_th(H, W, C_in, C_out, vmem_limit):
    """Largest divisor of H whose conv block fits the VMEM budget."""
    budget = max(vmem_limit // 4, 1 << 20)
    per_row = (((W + 2) * C_in + W * C_out) * 2) * 2 \
        + W * (3 * C_in * 2 + C_out * 4 + 3 * C_in * 2)
    th_max = max(1, budget // max(per_row, 1))
    th = 1
    for d in range(1, H + 1):
        if H % d == 0 and d <= th_max:
            th = d
    return th


def conv3x3_relu_nhwc(x, w, b):
    """x: (N,H,W,C_in), w: (C_out,C_in,3,3) torch layout, b: (C_out,) -> bf16."""
    N, H, W, C = x.shape
    C_out = w.shape[0]

    xb16 = x.astype(jnp.bfloat16)
    # TODO(synk): the zero padding could be folded into the kernel via border
    # masking to save one HBM pass per layer.
    xp = jnp.pad(xb16, ((0, 0), (1, 1), (1, 1), (0, 0)))
    wt = jnp.transpose(w, (2, 3, 1, 0)).astype(jnp.bfloat16) \
            .reshape(3, 3 * C, C_out)                       # (3, 3*C_in, C_out)
    b2 = b.reshape(1, C_out).astype(jnp.float32)

    vlim = _vmem_limit()
    th = _pick_th(H, W, C, C_out, vlim)
    n_hblk = H // th
    if n_hblk == 1:
        xb = xp[:, None]                                    # (N,1,H+2,W+2,C)
    else:
        xb = jnp.stack([xp[:, i * th:i * th + th + 2] for i in range(n_hblk)],
                       axis=1)                              # overlapping windows

    flops = 2 * N * H * W * C * 9 * C_out
    bytes_accessed = xb.size * 2 + wt.size * 2 + b2.size * 4 \
        + N * H * W * C_out * 2

    out = pl.pallas_call(
        functools.partial(_conv3x3_block_kernel, th=th, w_out=W),
        grid=(N, n_hblk),
        in_specs=[
            pl.BlockSpec((1, 1, th + 2, W + 2, C),
                         lambda n, hb: (n, hb, 0, 0, 0)),
            pl.BlockSpec((3, 3 * C, C_out), lambda n, hb: (0, 0, 0)),
            pl.BlockSpec((1, C_out), lambda n, hb: (0, 0)),
        ],
        out_specs=pl.BlockSpec((1, 1, th, W, C_out),
                               lambda n, hb: (n, hb, 0, 0, 0)),
        out_shape=jax.ShapeDtypeStruct((N, n_hblk, th, W, C_out), jnp.bfloat16),
        compiler_params=pltpu.CompilerParams(
            dimension_semantics=("parallel", "parallel"),
            vmem_limit_bytes=vlim),
        cost_estimate=pl.CostEstimate(flops=flops, transcendentals=0,
                                      bytes_accessed=bytes_accessed),
    )(xb, wt, b2)
    return out.reshape(N, H, W, C_out)


def gram_matrix_nhwc(feat):
    """feat: (N,H,W,C) -> (N,C,C), fastai convention: (x @ x^T) / (c*h*w)."""
    N, H, W, C = feat.shape
    HW = H * W
    x = feat.reshape(N, HW, C)                              # free reshape
    itemsize = jnp.dtype(x.dtype).itemsize

    vlim = _vmem_limit()
    budget = vlim // 4
    thw = HW
    if HW * C * itemsize * 2 > budget:
        for cand in (8192, 4096, 2048, 1024, 512, 256, 128, 64, 32, 16, 8):
            if HW % cand == 0 and cand * C * itemsize * 2 <= budget:
                thw = cand
                break
    n_k = HW // thw
    scale = 1.0 / float(C * HW)

    flops = 2 * N * HW * C * C
    bytes_accessed = x.size * itemsize + N * C * C * 4

    return pl.pallas_call(
        functools.partial(_gram_kernel, scale=scale),
        grid=(N, n_k),
        in_specs=[pl.BlockSpec((1, thw, C), lambda n, k: (n, k, 0))],
        out_specs=pl.BlockSpec((1, C, C), lambda n, k: (n, 0, 0)),
        out_shape=jax.ShapeDtypeStruct((N, C, C), jnp.float32),
        scratch_shapes=[pltpu.VMEM((C, C), jnp.float32)],
        compiler_params=pltpu.CompilerParams(
            dimension_semantics=("parallel", "arbitrary"),
            vmem_limit_bytes=vlim),
        cost_estimate=pl.CostEstimate(flops=flops, transcendentals=0,
                                      bytes_accessed=bytes_accessed),
    )(x)


def base_loss(a, b):
    """F.l1_loss (mean reduction)."""
    assert a.shape == b.shape
    E = a.size
    R = E // _LANES
    if E % _LANES != 0 or R < 8:
        # Tiny / ragged operands (e.g. Gram-difference terms): a Pallas launch
        # would be pure fixed overhead; use one fused XLA op instead.
        return jnp.mean(jnp.abs(a.astype(jnp.float32) - b.astype(jnp.float32)))

    a2 = a.reshape(R, _LANES)                               # free reshapes,
    b2 = b.reshape(R, _LANES)                               # no pad / no cast
    tr = min(1024, (R // 8) * 8)
    num_tiles = pl.cdiv(R, tr)
    valid_rows = R if (R % tr) != 0 else None

    out = pl.pallas_call(
        functools.partial(_l1_kernel, inv_count=1.0 / float(E),
                          valid_rows=valid_rows),
        grid=(num_tiles,),
        in_specs=[pl.BlockSpec((tr, _LANES), lambda i: (i, 0)),
                  pl.BlockSpec((tr, _LANES), lambda i: (i, 0))],
        out_specs=pl.BlockSpec((1, 1), lambda i: (0, 0)),
        out_shape=jax.ShapeDtypeStruct((1, 1), jnp.float32),
        scratch_shapes=[pltpu.VMEM((8, _LANES), jnp.float32)],
        compiler_params=pltpu.CompilerParams(
            dimension_semantics=("arbitrary",),
            vmem_limit_bytes=_vmem_limit()),
    )(a2, b2)
    return out[0, 0]


# ----------------------------------------------------------------------------
# FeatureLoss module
# ----------------------------------------------------------------------------
class FeatureLoss:
    """JAX/Pallas port of ArtLine's FeatureLoss.

    `params` is a list of (weight, bias) conv3x3 layers standing in for the
    hooked VGG layers; one feature map is captured per layer (post-ReLU).
    Public interface takes NCHW tensors (PyTorch convention).
    """

    def __init__(self, params, layer_wgts):
        self.params = params
        self.wgts = layer_wgts
        n = len(layer_wgts)
        self.metric_names = (['pixel'] + [f'feat_{i}' for i in range(n)]
                             + [f'gram_{i}' for i in range(n)])
        self.metrics = {}

    def make_features(self, x_nhwc):
        feats = []
        h = x_nhwc
        for (w, b) in self.params:
            h = conv3x3_relu_nhwc(h, w, b)      # bf16 features end-to-end
            feats.append(h)
        return feats

    def __call__(self, input, target):
        N = input.shape[0]
        x_in = jnp.transpose(input, (0, 2, 3, 1)).astype(jnp.float32)
        x_tg = jnp.transpose(target, (0, 2, 3, 1)).astype(jnp.float32)

        # Run input and target through the extractor in one fused batch.
        both = jnp.concatenate([x_in, x_tg], axis=0)
        feats = self.make_features(both)

        losses = [base_loss(x_in, x_tg)]                      # 'pixel'
        feat_terms = []
        gram_terms = []
        for f, w in zip(feats, self.wgts):
            f_in, f_out = f[:N], f[N:]
            feat_terms.append(base_loss(f_in, f_out) * w)
            g = gram_matrix_nhwc(f)                           # both halves at once
            gram_terms.append(base_loss(g[:N], g[N:]) * (w ** 2) * 5000.0)

        losses = losses + feat_terms + gram_terms
        self.metrics = dict(zip(self.metric_names, losses))
        return sum(losses)


# ----------------------------------------------------------------------------
# Demo
# ----------------------------------------------------------------------------
if __name__ == "__main__":
    key = jax.random.PRNGKey(0)
    k_in, k_tg, k_w1, k_b1, k_w2, k_b2 = jax.random.split(key, 6)

    # Small NCHW images: batch=2, channels=3, spatial=16
    N, C, H, W = 2, 3, 16, 16
    inp = jax.random.normal(k_in, (N, C, H, W), dtype=jnp.float32)
    tgt = jax.random.normal(k_tg, (N, C, H, W), dtype=jnp.float32)

    # Deterministic synthetic "VGG-like" feature extractor: two conv3x3+ReLU
    # layers whose outputs play the role of the hooked layer activations.
    C1, C2 = 8, 16
    w1 = 0.1 * jax.random.normal(k_w1, (C1, C, 3, 3), dtype=jnp.float32)
    b1 = 0.01 * jax.random.normal(k_b1, (C1,), dtype=jnp.float32)
    w2 = 0.1 * jax.random.normal(k_w2, (C2, C1, 3, 3), dtype=jnp.float32)
    b2 = 0.01 * jax.random.normal(k_b2, (C2,), dtype=jnp.float32)

    layer_wgts = [20.0, 70.0]   # ArtLine-style layer weights
    loss_mod = FeatureLoss([(w1, b1), (w2, b2)], layer_wgts)

    total = loss_mod(inp, tgt)
    jax.block_until_ready(total)
    assert total.shape == () and jnp.isfinite(total)
    print("KERNEL_OK")
</pallas_src>

<mosaic_0001>
module attributes {stable_mosaic.version = 11 : i64} {
  func.func @_conv3x3_block_kernel(%arg0: i32, %arg1: i32, %arg2: memref<1x1x18x18x3xbf16, #tpu.memory_space<vmem>>, %arg3: memref<3x9x8xbf16, #tpu.memory_space<vmem>>, %arg4: memref<1x8xf32, #tpu.memory_space<vmem>>, %arg5: memref<1x1x16x16x8xbf16, #tpu.memory_space<vmem>>) attributes {dimension_semantics = [#tpu.dimension_semantics<parallel>, #tpu.dimension_semantics<parallel>], iteration_bounds = array<i64: 4, 1>, scalar_prefetch = 0 : i64, scratch_operands = 0 : i64, tpu.core_type = #tpu.core_type<tc>, window_params = [{transform_indices = @transform_0, window_bounds = array<i64: 1, 1, 18, 18, 3>}, {pipeline_mode = #tpu.pipeline_mode<synchronous>, transform_indices = @transform_1, window_bounds = array<i64: 3, 9, 8>}, {pipeline_mode = #tpu.pipeline_mode<synchronous>, transform_indices = @transform_2, window_bounds = array<i64: 1, 8>}, {transform_indices = @transform_3, window_bounds = array<i64: 1, 1, 16, 16, 8>}]} {
    %c0 = arith.constant 0 : index
    %c0_0 = arith.constant 0 : index
    %c0_1 = arith.constant 0 : index
    %c0_2 = arith.constant 0 : index
    %c0_3 = arith.constant 0 : index
    %0 = vector.load %arg2[%c0, %c0_0, %c0_1, %c0_2, %c0_3] : memref<1x1x18x18x3xbf16, #tpu.memory_space<vmem>>, vector<1x1x18x18x3xbf16>
    %1 = vector.shape_cast %0 : vector<1x1x18x18x3xbf16> to vector<18x18x3xbf16>
    %cst = arith.constant 0.000000e+00 : f32
    %2 = vector.broadcast %cst : f32 to vector<256x8xf32>
    %3 = vector.extract_strided_slice %1 {offsets = [0, 0, 0], sizes = [16, 18, 3], strides = [1, 1, 1]} : vector<18x18x3xbf16> to vector<16x18x3xbf16>
    %4 = vector.extract_strided_slice %3 {offsets = [0, 0, 0], sizes = [16, 16, 3], strides = [1, 1, 1]} : vector<16x18x3xbf16> to vector<16x16x3xbf16>
    %5 = vector.extract_strided_slice %3 {offsets = [0, 1, 0], sizes = [16, 16, 3], strides = [1, 1, 1]} : vector<16x18x3xbf16> to vector<16x16x3xbf16>
    %6 = vector.extract_strided_slice %3 {offsets = [0, 2, 0], sizes = [16, 16, 3], strides = [1, 1, 1]} : vector<16x18x3xbf16> to vector<16x16x3xbf16>
    %7 = tpu.concatenate %4, %5, %6 in 2 : vector<16x16x3xbf16>, vector<16x16x3xbf16>, vector<16x16x3xbf16> -> vector<16x16x9xbf16>
    %8 = vector.shape_cast %7 : vector<16x16x9xbf16> to vector<256x9xbf16>
    %c0_4 = arith.constant 0 : index
    %c0_5 = arith.constant 0 : index
    %c0_6 = arith.constant 0 : index
    %9 = vector.load %arg3[%c0_4, %c0_5, %c0_6] : memref<3x9x8xbf16, #tpu.memory_space<vmem>>, vector<1x9x8xbf16>
    %10 = vector.shape_cast %9 : vector<1x9x8xbf16> to vector<9x8xbf16>
    %cst_7 = arith.constant dense<0.000000e+00> : vector<256x8xf32>
    %11 = tpu.matmul %8, %10, %cst_7 {dimension_numbers = #tpu.dot_dimension_numbers<[1], [0], [0], [1], [0, 0, 1, 1], [], []>} : vector<256x9xbf16>, vector<9x8xbf16>, vector<256x8xf32> -> vector<256x8xf32>
    %12 = arith.addf %2, %11 : vector<256x8xf32>
    %13 = vector.extract_strided_slice %1 {offsets = [1, 0, 0], sizes = [16, 18, 3], strides = [1, 1, 1]} : vector<18x18x3xbf16> to vector<16x18x3xbf16>
    %14 = vector.extract_strided_slice %13 {offsets = [0, 0, 0], sizes = [16, 16, 3], strides = [1, 1, 1]} : vector<16x18x3xbf16> to vector<16x16x3xbf16>
    %15 = vector.extract_strided_slice %13 {offsets = [0, 1, 0], sizes = [16, 16, 3], strides = [1, 1, 1]} : vector<16x18x3xbf16> to vector<16x16x3xbf16>
    %16 = vector.extract_strided_slice %13 {offsets = [0, 2, 0], sizes = [16, 16, 3], strides = [1, 1, 1]} : vector<16x18x3xbf16> to vector<16x16x3xbf16>
    %17 = tpu.concatenate %14, %15, %16 in 2 : vector<16x16x3xbf16>, vector<16x16x3xbf16>, vector<16x16x3xbf16> -> vector<16x16x9xbf16>
    %18 = vector.shape_cast %17 : vector<16x16x9xbf16> to vector<256x9xbf16>
    %c1 = arith.constant 1 : index
    %c0_8 = arith.constant 0 : index
    %c0_9 = arith.constant 0 : index
    %19 = vector.load %arg3[%c1, %c0_8, %c0_9] : memref<3x9x8xbf16, #tpu.memory_space<vmem>>, vector<1x9x8xbf16>
    %20 = vector.shape_cast %19 : vector<1x9x8xbf16> to vector<9x8xbf16>
    %cst_10 = arith.constant dense<0.000000e+00> : vector<256x8xf32>
    %21 = tpu.matmul %18, %20, %cst_10 {dimension_numbers = #tpu.dot_dimension_numbers<[1], [0], [0], [1], [0, 0, 1, 1], [], []>} : vector<256x9xbf16>, vector<9x8xbf16>, vector<256x8xf32> -> vector<256x8xf32>
    %22 = arith.addf %12, %21 : vector<256x8xf32>
    %23 = vector.extract_strided_slice %1 {offsets = [2, 0, 0], sizes = [16, 18, 3], strides = [1, 1, 1]} : vector<18x18x3xbf16> to vector<16x18x3xbf16>
    %24 = vector.extract_strided_slice %23 {offsets = [0, 0, 0], sizes = [16, 16, 3], strides = [1, 1, 1]} : vector<16x18x3xbf16> to vector<16x16x3xbf16>
    %25 = vector.extract_strided_slice %23 {offsets = [0, 1, 0], sizes = [16, 16, 3], strides = [1, 1, 1]} : vector<16x18x3xbf16> to vector<16x16x3xbf16>
    %26 = vector.extract_strided_slice %23 {offsets = [0, 2, 0], sizes = [16, 16, 3], strides = [1, 1, 1]} : vector<16x18x3xbf16> to vector<16x16x3xbf16>
    %27 = tpu.concatenate %24, %25, %26 in 2 : vector<16x16x3xbf16>, vector<16x16x3xbf16>, vector<16x16x3xbf16> -> vector<16x16x9xbf16>
    %28 = vector.shape_cast %27 : vector<16x16x9xbf16> to vector<256x9xbf16>
    %c2 = arith.constant 2 : index
    %c0_11 = arith.constant 0 : index
    %c0_12 = arith.constant 0 : index
    %29 = vector.load %arg3[%c2, %c0_11, %c0_12] : memref<3x9x8xbf16, #tpu.memory_space<vmem>>, vector<1x9x8xbf16>
    %30 = vector.shape_cast %29 : vector<1x9x8xbf16> to vector<9x8xbf16>
    %cst_13 = arith.constant dense<0.000000e+00> : vector<256x8xf32>
    %31 = tpu.matmul %28, %30, %cst_13 {dimension_numbers = #tpu.dot_dimension_numbers<[1], [0], [0], [1], [0, 0, 1, 1], [], []>} : vector<256x9xbf16>, vector<9x8xbf16>, vector<256x8xf32> -> vector<256x8xf32>
    %32 = arith.addf %22, %31 : vector<256x8xf32>
    %c0_14 = arith.constant 0 : index
    %c0_15 = arith.constant 0 : index
    %33 = vector.load %arg4[%c0_14, %c0_15] : memref<1x8xf32, #tpu.memory_space<vmem>>, vector<1x8xf32>
    %34 = vector.broadcast %33 : vector<1x8xf32> to vector<256x8xf32>
    %35 = arith.addf %32, %34 : vector<256x8xf32>
    %cst_16 = arith.constant 0.000000e+00 : f32
    %36 = vector.broadcast %cst_16 : f32 to vector<256x8xf32>
    %37 = arith.maximumf %35, %36 : vector<256x8xf32>
    %38 = arith.truncf %37 : vector<256x8xf32> to vector<256x8xbf16>
    %39 = vector.shape_cast %38 : vector<256x8xbf16> to vector<16x16x8xbf16>
    %c0_17 = arith.constant 0 : index
    %c0_18 = arith.constant 0 : index
    %c0_19 = arith.constant 0 : index
    %c0_20 = arith.constant 0 : index
    %c0_21 = arith.constant 0 : index
    %40 = vector.load %arg5[%c0_17, %c0_18, %c0_19, %c0_20, %c0_21] : memref<1x1x16x16x8xbf16, #tpu.memory_space<vmem>>, vector<1x1x16x16x8xbf16>
    %41 = vector.shape_cast %40 : vector<1x1x16x16x8xbf16> to vector<16x16x8xbf16>
    %42 = vector.shape_cast %39 : vector<16x16x8xbf16> to vector<1x1x16x16x8xbf16>
    tpu.vector_store %arg5[%c0_17, %c0_18, %c0_19, %c0_20, %c0_21], %42 {strides = array<i32>} : memref<1x1x16x16x8xbf16, #tpu.memory_space<vmem>>, vector<1x1x16x16x8xbf16>,
    return
  }
  func.func @transform_0(%arg0: i32, %arg1: i32) -> (i32, i32, i32, i32, i32) {
    %c0_i32 = arith.constant 0 : i32
    %c0_i32_0 = arith.constant 0 : i32
    %c0_i32_1 = arith.constant 0 : i32
    %c0_i32_2 = arith.constant 0 : i32
    return %arg0, %arg1, %c0_i32, %c0_i32_0, %c0_i32_1 : i32, i32, i32, i32, i32
  }
  func.func @transform_1(%arg0: i32, %arg1: i32) -> (i32, i32, i32) {
    %c0_i32 = arith.constant 0 : i32
    %c0_i32_0 = arith.constant 0 : i32
    %c0_i32_1 = arith.constant 0 : i32
    %c0_i32_2 = arith.constant 0 : i32
    return %c0_i32, %c0_i32_0, %c0_i32_1 : i32, i32, i32
  }
  func.func @transform_2(%arg0: i32, %arg1: i32) -> (i32, i32) {
    %c0_i32 = arith.constant 0 : i32
    %c0_i32_0 = arith.constant 0 : i32
    %c0_i32_1 = arith.constant 0 : i32
    return %c0_i32, %c0_i32_0 : i32, i32
  }
  func.func @transform_3(%arg0: i32, %arg1: i32) -> (i32, i32, i32, i32, i32) {
    %c0_i32 = arith.constant 0 : i32
    %c0_i32_0 = arith.constant 0 : i32
    %c0_i32_1 = arith.constant 0 : i32
    %c0_i32_2 = arith.constant 0 : i32
    return %arg0, %arg1, %c0_i32, %c0_i32_0, %c0_i32_1 : i32, i32, i32, i32, i32
  }
}

</mosaic_0001>

<llo_original>
// kernel: tpu_custom_call.1
$region0: #{tpu_custom_call.1}
  #allocation0 [shape = 'u32[]', space=smem, size = 0x4, offset = 0x4, fixed_abs, tag = 'smem constant byte address 0x4 - core index']
  #allocation1 [shape = 'u32[72,128]{1,0:T(1,128)}', space=vmem, size = 0x9000, scoped, tag = 'internal scratch']
  %s0 = inlined_call_operand.vmem [shape: bf16[4,1,18,18,3], index: 0, kind: input, shape index: {}]
  %s1 = inlined_call_operand.vmem [shape: bf16[3,9,8], index: 1, kind: input, shape index: {}]
  %s2 = inlined_call_operand.vmem [shape: f32[1,8], index: 2, kind: input, shape index: {}]
  %s3 = inlined_call_operand.vmem [shape: bf16[4,1,16,16,8], index: 3, kind: output, shape index: {}]
  %s4 = sld [smem:[#allocation0]]
  $region45: #{tpu_custom_call.1} parent=0
    _
  %s6 = ssub.s32 1, %s4
  %s7 = scalar_select 0, %s6, %s4
  loop: start=0, step=1, limit=6
  $region2: #{tpu_custom_call.1} parent=0 // loop_pre_header
    _
  $region3: #{tpu_custom_call.1} parent=0 // loop_header
    %s9 = sphi 0, %s13
    %p10 = scmp.ge.s32.totalorder %s9, 6
    %s16 = sphi 0, %s28
    %s17 = sphi 0, %s24
    %s18 = sphi 0, %s16
    %s19 = sphi 0, %s17
    %s20 = sphi 0, %s18
    %s21 = sphi 0, %s19
    %s33 = sphi 0, %s35
    %s36 = sphi 0, %s33
    %s37 = sphi 0, %s36
    %s53 = sphi 0, %s37
    %s57 = sphi 0, %s57
    %s59 = sphi 0, %s57
    %s60 = sphi 0, %s59
    %s74 = sphi 0, %s60
    %s78 = sphi 0, %s78
    %s80 = sphi 0, %s78
    %s81 = sphi 0, %s80
    %s95 = sphi 0, %s81
    %s103 = sphi 0, %s105
    %s106 = sphi 0, %s103
    %s107 = sphi 0, %s106
    %s123 = sphi 0, %s107
  $region4: #{tpu_custom_call.1} parent=0 // loop_header_branch
    %12 = sbr.rel (%p10) target = $region8
  $region5: #{tpu_custom_call.1} parent=0 // loop_body
    %s14 = ssub.s32 %s9, 1
    %s15 = ssub.s32 %s9, 2
    %s22 = sadd.s32 1, %s17
    %p23 = scmp.ge.s32.totalorder %s22, 1
    %s24 = scalar_select %p23, 0, %s22
    %s25 = sadd.s32 1, %s16
    %s26 = scalar_select %p23, %s25, %s16
    %p27 = scmp.ge.s32.totalorder %s26, 4
    %s28 = scalar_select %p27, 0, %s26
    %s29 = ssub.s32 %s16, %s28
    %s30 = ssub.s32 %s17, %s24
    %s31 = sor.u32 %s29, %s30
    %p32 = scmp.eq.s32.totalorder %s31, 0
    %s34 = sadd.s32 %s33, 1
    %s35 = scalar_select %p32, %s33, %s34
    %p38 = pneg %p32
    %p39 = scmp.eq.s32.totalorder %s9, 3
    %p40 = por %p38, %p39
    %p41 = scmp.ne.s32.totalorder %s33, %s36
    %p42 = scmp.eq.s32.totalorder %s9, 0
    %p43 = por %p41, %p42
    %p44 = scmp.ne.s32.totalorder %s33, %s36
    %p45 = scmp.eq.s32.totalorder %s14, 3
    %p46 = por %p44, %p45
    %p47 = scmp.ne.s32.totalorder %s36, %s37
    %p48 = scmp.eq.s32.totalorder %s14, 0
    %p49 = por %p47, %p48
    %p50 = scmp.ne.s32.totalorder %s36, %s37
    %p51 = scmp.eq.s32.totalorder %s15, 3
    %p52 = por %p50, %p51
    %p54 = scmp.ne.s32.totalorder %s37, %s53
    %p55 = scmp.eq.s32.totalorder %s15, 0
    %p56 = por %p54, %p55
    %s58 = sadd.s32 %s57, 1
    %p61 = scmp.eq.s32.totalorder %s9, 3
    %p62 = scmp.ne.s32.totalorder %s57, %s59
    %p63 = scmp.eq.s32.totalorder %s9, 0
    %p64 = por %p62, %p63
    %p65 = scmp.ne.s32.totalorder %s57, %s59
    %p66 = scmp.eq.s32.totalorder %s14, 3
    %p67 = por %p65, %p66
    %p68 = scmp.ne.s32.totalorder %s59, %s60
    %p69 = scmp.eq.s32.totalorder %s14, 0
    %p70 = por %p68, %p69
    %p71 = scmp.ne.s32.totalorder %s59, %s60
    %p72 = scmp.eq.s32.totalorder %s15, 3
    %p73 = por %p71, %p72
    %p75 = scmp.ne.s32.totalorder %s60, %s74
    %p76 = scmp.eq.s32.totalorder %s15, 0
    %p77 = por %p75, %p76
    %s79 = sadd.s32 %s78, 1
    %p82 = scmp.eq.s32.totalorder %s9, 3
    %p83 = scmp.ne.s32.totalorder %s78, %s80
    %p84 = scmp.eq.s32.totalorder %s9, 0
    %p85 = por %p83, %p84
    %p86 = scmp.ne.s32.totalorder %s78, %s80
    %p87 = scmp.eq.s32.totalorder %s14, 3
    %p88 = por %p86, %p87
    %p89 = scmp.ne.s32.totalorder %s80, %s81
    %p90 = scmp.eq.s32.totalorder %s14, 0
    %p91 = por %p89, %p90
    %p92 = scmp.ne.s32.totalorder %s80, %s81
    %p93 = scmp.eq.s32.totalorder %s15, 3
    %p94 = por %p92, %p93
    %p96 = scmp.ne.s32.totalorder %s81, %s95
    %p97 = scmp.eq.s32.totalorder %s15, 0
    %p98 = por %p96, %p97
    %s99 = ssub.s32 %s16, %s28
    %s100 = ssub.s32 %s17, %s24
    %s101 = sor.u32 %s99, %s100
    %p102 = scmp.eq.s32.totalorder %s101, 0
    %s104 = sadd.s32 %s103, 1
    %s105 = scalar_select %p102, %s103, %s104
    %p108 = pneg %p102
    %p109 = scmp.eq.s32.totalorder %s9, 3
    %p110 = por %p108, %p109
    %p111 = scmp.ne.s32.totalorder %s103, %s106
    %p112 = scmp.eq.s32.totalorder %s9, 0
    %p113 = por %p111, %p112
    %p114 = scmp.ne.s32.totalorder %s103, %s106
    %p115 = scmp.eq.s32.totalorder %s14, 3
    %p116 = por %p114, %p115
    %p117 = scmp.ne.s32.totalorder %s106, %s107
    %p118 = scmp.eq.s32.totalorder %s14, 0
    %p119 = por %p117, %p118
    %p120 = scmp.ne.s32.totalorder %s106, %s107
    %p121 = scmp.eq.s32.totalorder %s15, 3
    %p122 = por %p120, %p121
    %p124 = scmp.ne.s32.totalorder %s107, %s123
    %p125 = scmp.eq.s32.totalorder %s15, 0
    %p126 = por %p124, %p125
    %p127 = scmp.le.s32.totalorder 1, %s9
    %p128 = scmp.lt.s32.totalorder %s9, 5
    %p129 = pnand %p127, %p128
    %p130 = pneg %p129
    // Predicated region
    $region9: #{tpu_custom_call.1} parent=5 // pred_check
      _
    $region10: #{tpu_custom_call.1} parent=5 // pred_check_branch
      %132 = sbr.rel (%p129) target = $region12
    $region11: #{tpu_custom_call.1} parent=5 // pred_region
      %s133 = ssub.s32 %s9, 1
      // Predicated region
      $region13: #{tpu_custom_call.1} parent=11 // pred_check
        %p134 = pneg %p70
      $region14: #{tpu_custom_call.1} parent=11 // pred_check_branch
        %136 = sbr.rel (%p134) target = $region16
      $region15: #{tpu_custom_call.1} parent=11 // pred_region
        _
      $region16: #{tpu_custom_call.1} parent=11 // pred_fallthru
        _
      // Predicated region
      $region17: #{tpu_custom_call.1} parent=11 // pred_check
        %p137 = pneg %p91
      $region18: #{tpu_custom_call.1} parent=11 // pred_check_branch
        %139 = sbr.rel (%p137) target = $region20
      $region19: #{tpu_custom_call.1} parent=11 // pred_region
        _
      $region20: #{tpu_custom_call.1} parent=11 // pred_fallthru
        _
    $region12: #{tpu_custom_call.1} parent=5 // pred_fallthru
      _
    %p140 = scmp.lt.s32.totalorder %s9, 4
    // Predicated region
    $region21: #{tpu_custom_call.1} parent=5 // pred_check
      %p141 = pneg %p140
    $region22: #{tpu_custom_call.1} parent=5 // pred_check_branch
      %143 = sbr.rel (%p141) target = $region24
    $region23: #{tpu_custom_call.1} parent=5 // pred_region
      // Predicated region
      $region25: #{tpu_custom_call.1} parent=23 // pred_check
        %p144 = pneg %p43
      $region26: #{tpu_custom_call.1} parent=23 // pred_check_branch
        %146 = sbr.rel (%p144) target = $region28
      $region27: #{tpu_custom_call.1} parent=23 // pred_region
        %p147 = scmp.lt.s32.totalorder %s16, 3
        %s148 = scalar_select %p147, %s16, 3
        %p149 = scmp.lt.s32.totalorder %s17, 0
        %s150 = scalar_select %p149, %s17, 0
        %s151 = smul.addr %s150, 54
        %s152 = smul.addr %s148, 54
        %s153 = sadd.s32 %s151, %s152
        %s154 = smul.addr %s153, 4
        %s155 = scalar_lea.vmem %s0, %s154
      $region28: #{tpu_custom_call.1} parent=23 // pred_fallthru
        _
    $region24: #{tpu_custom_call.1} parent=5 // pred_fallthru
      _
    %p156 = scmp.le.s32.totalorder 1, %s9
    %p157 = scmp.lt.s32.totalorder %s9, 5
    %p158 = pnand %p156, %p157
    %p159 = pneg %p158
    // Predicated region
    $region29: #{tpu_custom_call.1} parent=5 // pred_check
      _
    $region30: #{tpu_custom_call.1} parent=5 // pred_check_branch
      %161 = sbr.rel (%p158) target = $region32
    $region31: #{tpu_custom_call.1} parent=5 // pred_region
      %s162 = ssub.s32 %s9, 1
      %p163 = scmp.lt.s32.totalorder %s18, 3
      %s164 = scalar_select %p163, %s18, 3
      %p165 = scmp.lt.s32.totalorder %s19, 0
      %s166 = scalar_select %p165, %s19, 0
      %s167 = smul.addr %s166, 54
      %s168 = smul.addr %s164, 54
      %s169 = sadd.s32 %s167, %s168
      %s170 = smul.addr %s169, 4
      %s171 = scalar_lea.vmem %s0, %s170
      %p172 = pneg %p49
      %p173 = pneg %p46
      %p174 = pneg %p70
      %p175 = pneg %p67
      %p176 = pneg %p91
      %p177 = pneg %p88
      %p178 = pneg %p119
      %p179 = pneg %p116
      %p180 = scmp.lt.s32.totalorder %s18, 3
      %s181 = scalar_select %p180, %s18, 3
      %p182 = scmp.lt.s32.totalorder %s19, 0
      %s183 = scalar_select %p182, %s19, 0
      %s184 = smul.addr %s183, 32
      %s185 = smul.addr %s181, 32
      %s186 = sadd.s32 %s184, %s185
      %s187 = smul.addr %s186, 4
      %s188 = scalar_lea.vmem %s3, %s187
      %p189 = scmp.lt.s32.totalorder %s18, 3
      %s190 = scalar_select %p189, %s18, 3
      %p191 = scmp.lt.s32.totalorder %s19, 0
      %s192 = scalar_select %p191, %s19, 0
      %s193 = smul.addr %s192, 54
      %s194 = smul.addr %s190, 54
      %s195 = sadd.s32 %s193, %s194
      %s196 = smul.addr %s195, 4
      %s197 = scalar_lea.vmem %s0, %s196
      %p198 = scmp.lt.s32.totalorder %s18, 3
      %s199 = scalar_select %p198, %s18, 3
      %p200 = scmp.lt.s32.totalorder %s19, 0
      %s201 = scalar_select %p200, %s19, 0
      %s202 = smul.addr %s201, 32
      %s203 = smul.addr %s199, 32
      %s204 = sadd.s32 %s202, %s203
      %s205 = smul.addr %s204, 4
      %s206 = scalar_lea.vmem %s3, %s205
      %v208 = vld [vmem:[%s197] sm:$0xf]
      %v209 = vld [vmem:[%s197 + $0x4] sm:$0xf]
      %v210 = vld [vmem:[%s197 + $0x8] sm:$0x1]
      %v211 = vld [vmem:[%s197 + $0xc] sm:$0xf]
      %v212 = vld [vmem:[%s197 + $0x10] sm:$0xf]
      %v213 = vld [vmem:[%s197 + $0x14] sm:$0x1]
      %v214 = vld [vmem:[%s197 + $0x18] sm:$0xf]
      %v215 = vld [vmem:[%s197 + $0x1c] sm:$0xf]
      %v216 = vld [vmem:[%s197 + $0x20] sm:$0x1]
      %v217 = vld [vmem:[%s197 + $0x24] sm:$0xf]
      %v218 = vld [vmem:[%s197 + $0x28] sm:$0xf]
      %v219 = vld [vmem:[%s197 + $0x2c] sm:$0x1]
      %v220 = vld [vmem:[%s197 + $0x30] sm:$0xf]
      %v221 = vld [vmem:[%s197 + $0x34] sm:$0xf]
      %v222 = vld [vmem:[%s197 + $0x38] sm:$0x1]
      %v223 = vld [vmem:[%s197 + $0x3c] sm:$0xf]
      %v224 = vld [vmem:[%s197 + $0x40] sm:$0xf]
      %v225 = vld [vmem:[%s197 + $0x44] sm:$0x1]
      %v226 = vld [vmem:[%s197 + $0x48] sm:$0xf]
      %v227 = vld [vmem:[%s197 + $0x4c] sm:$0xf]
      %v228 = vld [vmem:[%s197 + $0x50] sm:$0x1]
      %v229 = vld [vmem:[%s197 + $0x54] sm:$0xf]
      %v230 = vld [vmem:[%s197 + $0x58] sm:$0xf]
      %v231 = vld [vmem:[%s197 + $0x5c] sm:$0x1]
      %v232 = vld [vmem:[%s197 + $0x60] sm:$0xf]
      %v233 = vld [vmem:[%s197 + $0x64] sm:$0xf]
      %v234 = vld [vmem:[%s197 + $0x68] sm:$0x1]
      %v235 = vld [vmem:[%s197 + $0x6c] sm:$0xf]
      %v236 = vld [vmem:[%s197 + $0x70] sm:$0xf]
      %v237 = vld [vmem:[%s197 + $0x74] sm:$0x1]
      %v238 = vld [vmem:[%s197 + $0x78] sm:$0xf]
      %v239 = vld [vmem:[%s197 + $0x7c] sm:$0xf]
      %v240 = vld [vmem:[%s197 + $0x80] sm:$0x1]
      %v241 = vld [vmem:[%s197 + $0x84] sm:$0xf]
      %v242 = vld [vmem:[%s197 + $0x88] sm:$0xf]
      %v243 = vld [vmem:[%s197 + $0x8c] sm:$0x1]
      %v244 = vld [vmem:[%s197 + $0x90] sm:$0xf]
      %v245 = vld [vmem:[%s197 + $0x94] sm:$0xf]
      %v246 = vld [vmem:[%s197 + $0x98] sm:$0x1]
      %v247 = vld [vmem:[%s197 + $0x9c] sm:$0xf]
      %v248 = vld [vmem:[%s197 + $0xa0] sm:$0xf]
      %v249 = vld [vmem:[%s197 + $0xa4] sm:$0x1]
      %v250 = vld [vmem:[%s197 + $0xa8] sm:$0xf]
      %v251 = vld [vmem:[%s197 + $0xac] sm:$0xf]
      %v252 = vld [vmem:[%s197 + $0xb0] sm:$0x1]
      %v253 = vld [vmem:[%s197 + $0xb4] sm:$0xf]
      %v254 = vld [vmem:[%s197 + $0xb8] sm:$0xf]
      %v255 = vld [vmem:[%s197 + $0xbc] sm:$0x1]
      %v256 = vld [vmem:[%s197 + $0xc0] sm:$0xf]
      %v257 = vld [vmem:[%s197 + $0xc4] sm:$0xf]
      %v258 = vld [vmem:[%s197 + $0xc8] sm:$0x1]
      %v259 = vld [vmem:[%s197 + $0xcc] sm:$0xf]
      %v260 = vld [vmem:[%s197 + $0xd0] sm:$0xf]
      %v261 = vld [vmem:[%s197 + $0xd4] sm:$0x1]
      %v294 = vunpack.c.l.b16 %v208
      %v295 = vunpack.c.l.b16 %v209
      %v296 = vunpack.c.l.b16 %v211
      %v297 = vunpack.c.l.b16 %v212
      %v298 = vunpack.c.l.b16 %v214
      %v299 = vunpack.c.l.b16 %v215
      %v300 = vunpack.c.l.b16 %v217
      %v301 = vunpack.c.l.b16 %v218
      %v302 = vunpack.c.l.b16 %v220
      %v303 = vunpack.c.l.b16 %v221
      %v304 = vunpack.c.l.b16 %v223
      %v305 = vunpack.c.l.b16 %v224
      %v306 = vunpack.c.l.b16 %v226
      %v307 = vunpack.c.l.b16 %v227
      %v308 = vunpack.c.l.b16 %v229
      %v309 = vunpack.c.l.b16 %v230
      %v310 = vunpack.c.l.b16 %v232
      %v311 = vunpack.c.l.b16 %v233
      %v312 = vunpack.c.l.b16 %v235
      %v313 = vunpack.c.l.b16 %v236
      %v314 = vunpack.c.l.b16 %v238
      %v315 = vunpack.c.l.b16 %v239
      %v316 = vunpack.c.l.b16 %v241
      %v317 = vunpack.c.l.b16 %v242
      %v318 = vunpack.c.l.b16 %v244
      %v319 = vunpack.c.l.b16 %v245
      %v320 = vunpack.c.l.b16 %v247
      %v321 = vunpack.c.l.b16 %v248
      %v322 = vunpack.c.l.b16 %v250
      %v323 = vunpack.c.l.b16 %v251
      %v324 = vunpack.c.l.b16 %v253
      %v325 = vunpack.c.l.b16 %v254
      %v326 = vpack.c.b16 %v295, %v294
      %v327 = vpack.c.b16 %v297, %v296
      %v328 = vpack.c.b16 %v299, %v298
      %v329 = vpack.c.b16 %v301, %v300
      %v330 = vpack.c.b16 %v303, %v302
      %v331 = vpack.c.b16 %v305, %v304
      %v332 = vpack.c.b16 %v307, %v306
      %v333 = vpack.c.b16 %v309, %v308
      %v334 = vpack.c.b16 %v311, %v310
      %v335 = vpack.c.b16 %v313, %v312
      %v336 = vpack.c.b16 %v315, %v314
      %v337 = vpack.c.b16 %v317, %v316
      %v338 = vpack.c.b16 %v319, %v318
      %v339 = vpack.c.b16 %v321, %v320
      %v340 = vpack.c.b16 %v323, %v322
      %v341 = vpack.c.b16 %v325, %v324
      %v358 = vunpack.c.l.b16 %v210
      %v359 = vunpack.c.l.b16 %v213
      %v360 = vunpack.c.l.b16 %v216
      %v361 = vunpack.c.l.b16 %v219
      %v362 = vunpack.c.l.b16 %v222
      %v363 = vunpack.c.l.b16 %v225
      %v364 = vunpack.c.l.b16 %v228
      %v365 = vunpack.c.l.b16 %v231
      %v366 = vunpack.c.l.b16 %v234
      %v367 = vunpack.c.l.b16 %v237
      %v368 = vunpack.c.l.b16 %v240
      %v369 = vunpack.c.l.b16 %v243
      %v370 = vunpack.c.l.b16 %v246
      %v371 = vunpack.c.l.b16 %v249
      %v372 = vunpack.c.l.b16 %v252
      %v373 = vunpack.c.l.b16 %v255
      %v374 = vpack.c.b16 %v358, %v358
      %v375 = vpack.c.b16 %v359, %v359
      %v376 = vpack.c.b16 %v360, %v360
      %v377 = vpack.c.b16 %v361, %v361
      %v378 = vpack.c.b16 %v362, %v362
      %v379 = vpack.c.b16 %v363, %v363
      %v380 = vpack.c.b16 %v364, %v364
      %v381 = vpack.c.b16 %v365, %v365
      %v382 = vpack.c.b16 %v366, %v366
      %v383 = vpack.c.b16 %v367, %v367
      %v384 = vpack.c.b16 %v368, %v368
      %v385 = vpack.c.b16 %v369, %v369
      %v386 = vpack.c.b16 %v370, %v370
      %v387 = vpack.c.b16 %v371, %v371
      %v388 = vpack.c.b16 %v372, %v372
      %v389 = vpack.c.b16 %v373, %v373
      %vm390 = vsmask.f32 7424
      %v392 = vshrl.u32 %v326, 16
      %v394 = vshll.u32 %v326, 16
      %v396 = vrot.slane %v394, 1
      %v397 = vor.u32 %v392, %v396
      %v399 = vshll.u32 %v374, 16
      %v401 = vrot.slane %v399, 1
      %v402 = vsel %vm390, %v397, %v401
      %v404 = vshrl.u32 %v327, 16
      %v406 = vshll.u32 %v327, 16
      %v408 = vrot.slane %v406, 1
      %v409 = vor.u32 %v404, %v408
      %v411 = vshll.u32 %v375, 16
      %v413 = vrot.slane %v411, 1
      %v414 = vsel %vm390, %v409, %v413
      %v416 = vshrl.u32 %v328, 16
      %v418 = vshll.u32 %v328, 16
      %v420 = vrot.slane %v418, 1
      %v421 = vor.u32 %v416, %v420
      %v423 = vshll.u32 %v376, 16
      %v425 = vrot.slane %v423, 1
      %v426 = vsel %vm390, %v421, %v425
      %v428 = vshrl.u32 %v329, 16
      %v430 = vshll.u32 %v329, 16
      %v432 = vrot.slane %v430, 1
      %v433 = vor.u32 %v428, %v432
      %v435 = vshll.u32 %v377, 16
      %v437 = vrot.slane %v435, 1
      %v438 = vsel %vm390, %v433, %v437
      %v440 = vshrl.u32 %v330, 16
      %v442 = vshll.u32 %v330, 16
      %v444 = vrot.slane %v442, 1
      %v445 = vor.u32 %v440, %v444
      %v447 = vshll.u32 %v378, 16
      %v449 = vrot.slane %v447, 1
      %v450 = vsel %vm390, %v445, %v449
      %v452 = vshrl.u32 %v331, 16
      %v454 = vshll.u32 %v331, 16
      %v456 = vrot.slane %v454, 1
      %v457 = vor.u32 %v452, %v456
      %v459 = vshll.u32 %v379, 16
      %v461 = vrot.slane %v459, 1
      %v462 = vsel %vm390, %v457, %v461
      %v464 = vshrl.u32 %v332, 16
      %v466 = vshll.u32 %v332, 16
      %v468 = vrot.slane %v466, 1
      %v469 = vor.u32 %v464, %v468
      %v471 = vshll.u32 %v380, 16
      %v473 = vrot.slane %v471, 1
      %v474 = vsel %vm390, %v469, %v473
      %v476 = vshrl.u32 %v333, 16
      %v478 = vshll.u32 %v333, 16
      %v480 = vrot.slane %v478, 1
      %v481 = vor.u32 %v476, %v480
      %v483 = vshll.u32 %v381, 16
      %v485 = vrot.slane %v483, 1
      %v486 = vsel %vm390, %v481, %v485
      %v488 = vshrl.u32 %v334, 16
      %v490 = vshll.u32 %v334, 16
      %v492 = vrot.slane %v490, 1
      %v493 = vor.u32 %v488, %v492
      %v495 = vshll.u32 %v382, 16
      %v497 = vrot.slane %v495, 1
      %v498 = vsel %vm390, %v493, %v497
      %v500 = vshrl.u32 %v335, 16
      %v502 = vshll.u32 %v335, 16
      %v504 = vrot.slane %v502, 1
      %v505 = vor.u32 %v500, %v504
      %v507 = vshll.u32 %v383, 16
      %v509 = vrot.slane %v507, 1
      %v510 = vsel %vm390, %v505, %v509
      %v512 = vshrl.u32 %v336, 16
      %v514 = vshll.u32 %v336, 16
      %v516 = vrot.slane %v514, 1
      %v517 = vor.u32 %v512, %v516
      %v519 = vshll.u32 %v384, 16
      %v521 = vrot.slane %v519, 1
      %v522 = vsel %vm390, %v517, %v521
      %v524 = vshrl.u32 %v337, 16
      %v526 = vshll.u32 %v337, 16
      %v528 = vrot.slane %v526, 1
      %v529 = vor.u32 %v524, %v528
      %v531 = vshll.u32 %v385, 16
      %v533 = vrot.slane %v531, 1
      %v534 = vsel %vm390, %v529, %v533
      %v536 = vshrl.u32 %v338, 16
      %v538 = vshll.u32 %v338, 16
      %v540 = vrot.slane %v538, 1
      %v541 = vor.u32 %v536, %v540
      %v543 = vshll.u32 %v386, 16
      %v545 = vrot.slane %v543, 1
      %v546 = vsel %vm390, %v541, %v545
      %v548 = vshrl.u32 %v339, 16
      %v550 = vshll.u32 %v339, 16
      %v552 = vrot.slane %v550, 1
      %v553 = vor.u32 %v548, %v552
      %v555 = vshll.u32 %v387, 16
      %v557 = vrot.slane %v555, 1
      %v558 = vsel %vm390, %v553, %v557
      %v560 = vshrl.u32 %v340, 16
      %v562 = vshll.u32 %v340, 16
      %v564 = vrot.slane %v562, 1
      %v565 = vor.u32 %v560, %v564
      %v567 = vshll.u32 %v388, 16
      %v569 = vrot.slane %v567, 1
      %v570 = vsel %vm390, %v565, %v569
      %v572 = vshrl.u32 %v341, 16
      %v574 = vshll.u32 %v341, 16
      %v576 = vrot.slane %v574, 1
      %v577 = vor.u32 %v572, %v576
      %v579 = vshll.u32 %v389, 16
      %v581 = vrot.slane %v579, 1
      %v582 = vsel %vm390, %v577, %v581
      %583 = vrot.lane.b32.xlu0 %v402, 3
      %v584 = vpop.permute.xlu0 %583
      %585 = vrot.lane.b32.xlu0 %v414, 3
      %v586 = vpop.permute.xlu0 %585
      %587 = vrot.lane.b32.xlu0 %v426, 3
      %v588 = vpop.permute.xlu0 %587
      %589 = vrot.lane.b32.xlu0 %v438, 3
      %v590 = vpop.permute.xlu0 %589
      %591 = vrot.lane.b32.xlu0 %v450, 3
      %v592 = vpop.permute.xlu0 %591
      %593 = vrot.lane.b32.xlu0 %v462, 3
      %v594 = vpop.permute.xlu0 %593
      %595 = vrot.lane.b32.xlu0 %v474, 3
      %v596 = vpop.permute.xlu0 %595
      %597 = vrot.lane.b32.xlu0 %v486, 3
      %v598 = vpop.permute.xlu0 %597
      %599 = vrot.lane.b32.xlu0 %v498, 3
      %v600 = vpop.permute.xlu0 %599
      %601 = vrot.lane.b32.xlu0 %v510, 3
      %v602 = vpop.permute.xlu0 %601
      %603 = vrot.lane.b32.xlu0 %v522, 3
      %v604 = vpop.permute.xlu0 %603
      %605 = vrot.lane.b32.xlu0 %v534, 3
      %v606 = vpop.permute.xlu0 %605
      %607 = vrot.lane.b32.xlu0 %v546, 3
      %v608 = vpop.permute.xlu0 %607
      %609 = vrot.lane.b32.xlu0 %v558, 3
      %v610 = vpop.permute.xlu0 %609
      %611 = vrot.lane.b32.xlu0 %v570, 3
      %v612 = vpop.permute.xlu0 %611
      %613 = vrot.lane.b32.xlu0 %v582, 3
      %v614 = vpop.permute.xlu0 %613
      %vm615 = vcmask 1046528
      %v616 = vrot.slane %v326, 1
      %v617 = vrot.slane %v374, 1
      %v618 = vsel %vm615, %v616, %v617
      %v619 = vrot.slane %v327, 1
      %v620 = vrot.slane %v375, 1
      %v621 = vsel %vm615, %v619, %v620
      %v622 = vrot.slane %v328, 1
      %v623 = vrot.slane %v376, 1
      %v624 = vsel %vm615, %v622, %v623
      %v625 = vrot.slane %v329, 1
      %v626 = vrot.slane %v377, 1
      %v627 = vsel %vm615, %v625, %v626
      %v628 = vrot.slane %v330, 1
      %v629 = vrot.slane %v378, 1
      %v630 = vsel %vm615, %v628, %v629
      %v631 = vrot.slane %v331, 1
      %v632 = vrot.slane %v379, 1
      %v633 = vsel %vm615, %v631, %v632
      %v634 = vrot.slane %v332, 1
      %v635 = vrot.slane %v380, 1
      %v636 = vsel %vm615, %v634, %v635
      %v637 = vrot.slane %v333, 1
      %v638 = vrot.slane %v381, 1
      %v639 = vsel %vm615, %v637, %v638
      %v640 = vrot.slane %v334, 1
      %v641 = vrot.slane %v382, 1
      %v642 = vsel %vm615, %v640, %v641
      %v643 = vrot.slane %v335, 1
      %v644 = vrot.slane %v383, 1
      %v645 = vsel %vm615, %v643, %v644
      %v646 = vrot.slane %v336, 1
      %v647 = vrot.slane %v384, 1
      %v648 = vsel %vm615, %v646, %v647
      %v649 = vrot.slane %v337, 1
      %v650 = vrot.slane %v385, 1
      %v651 = vsel %vm615, %v649, %v650
      %v652 = vrot.slane %v338, 1
      %v653 = vrot.slane %v386, 1
      %v654 = vsel %vm615, %v652, %v653
      %v655 = vrot.slane %v339, 1
      %v656 = vrot.slane %v387, 1
      %v657 = vsel %vm615, %v655, %v656
      %v658 = vrot.slane %v340, 1
      %v659 = vrot.slane %v388, 1
      %v660 = vsel %vm615, %v658, %v659
      %v661 = vrot.slane %v341, 1
      %v662 = vrot.slane %v389, 1
      %v663 = vsel %vm615, %v661, %v662
      %664 = vrot.lane.b32.xlu0 %v618, 6
      %v665 = vpop.permute.xlu0 %664
      %666 = vrot.lane.b32.xlu0 %v621, 6
      %v667 = vpop.permute.xlu0 %666
      %668 = vrot.lane.b32.xlu0 %v624, 6
      %v669 = vpop.permute.xlu0 %668
      %670 = vrot.lane.b32.xlu0 %v627, 6
      %v671 = vpop.permute.xlu0 %670
      %672 = vrot.lane.b32.xlu0 %v630, 6
      %v673 = vpop.permute.xlu0 %672
      %674 = vrot.lane.b32.xlu0 %v633, 6
      %v675 = vpop.permute.xlu0 %674
      %676 = vrot.lane.b32.xlu0 %v636, 6
      %v677 = vpop.permute.xlu0 %676
      %678 = vrot.lane.b32.xlu0 %v639, 6
      %v679 = vpop.permute.xlu0 %678
      %680 = vrot.lane.b32.xlu0 %v642, 6
      %v681 = vpop.permute.xlu0 %680
      %682 = vrot.lane.b32.xlu0 %v645, 6
      %v683 = vpop.permute.xlu0 %682
      %684 = vrot.lane.b32.xlu0 %v648, 6
      %v685 = vpop.permute.xlu0 %684
      %686 = vrot.lane.b32.xlu0 %v651, 6
      %v687 = vpop.permute.xlu0 %686
      %688 = vrot.lane.b32.xlu0 %v654, 6
      %v689 = vpop.permute.xlu0 %688
      %690 = vrot.lane.b32.xlu0 %v657, 6
      %v691 = vpop.permute.xlu0 %690
      %692 = vrot.lane.b32.xlu0 %v660, 6
      %v693 = vpop.permute.xlu0 %692
      %694 = vrot.lane.b32.xlu0 %v663, 6
      %v695 = vpop.permute.xlu0 %694
      %vm696 = vcmask 23552
      %v698 = vsel %vm696, %v326, %v584
      %v700 = vsel %vm696, %v327, %v586
      %v702 = vsel %vm696, %v328, %v588
      %v704 = vsel %vm696, %v329, %v590
      %v706 = vsel %vm696, %v330, %v592
      %v708 = vsel %vm696, %v331, %v594
      %v710 = vsel %vm696, %v332, %v596
      %v712 = vsel %vm696, %v333, %v598
      %v714 = vsel %vm696, %v334, %v600
      %v716 = vsel %vm696, %v335, %v602
      %v718 = vsel %vm696, %v336, %v604
      %v720 = vsel %vm696, %v337, %v606
      %v722 = vsel %vm696, %v338, %v608
      %v724 = vsel %vm696, %v339, %v610
      %v726 = vsel %vm696, %v340, %v612
      %v728 = vsel %vm696, %v341, %v614
      %vm729 = vcmask 48128
      %v731 = vsel %vm729, %v698, %v665
      %v733 = vsel %vm729, %v700, %v667
      %v735 = vsel %vm729, %v702, %v669
      %v737 = vsel %vm729, %v704, %v671
      %v739 = vsel %vm729, %v706, %v673
      %v741 = vsel %vm729, %v708, %v675
      %v743 = vsel %vm729, %v710, %v677
      %v745 = vsel %vm729, %v712, %v679
      %v747 = vsel %vm729, %v714, %v681
      %v749 = vsel %vm729, %v716, %v683
      %v751 = vsel %vm729, %v718, %v685
      %v753 = vsel %vm729, %v720, %v687
      %v755 = vsel %vm729, %v722, %v689
      %v757 = vsel %vm729, %v724, %v691
      %v759 = vsel %vm729, %v726, %v693
      %v761 = vsel %vm729, %v728, %v695
      %v762 = vld [vmem:[%s1] sm:$0xf]
      %v763 = vld [vmem:[%s1 + $0x4] sm:$0x1]
      %v766 = vunpack.c.l.b16 %v256
      %v767 = vunpack.c.l.b16 %v257
      %v768 = vpack.c.b16 %v767, %v766
      %v770 = vunpack.c.l.b16 %v258
      %v771 = vpack.c.b16 %v770, %v770
      %v773 = vshrl.u32 %v768, 16
      %v775 = vshll.u32 %v768, 16
      %v777 = vrot.slane %v775, 1
      %v778 = vor.u32 %v773, %v777
      %v780 = vshll.u32 %v771, 16
      %v782 = vrot.slane %v780, 1
      %v783 = vsel %vm390, %v778, %v782
      %784 = vrot.lane.b32.xlu0 %v783, 3
      %v785 = vpop.permute.xlu0 %784
      %v786 = vrot.slane %v768, 1
      %v787 = vrot.slane %v771, 1
      %v788 = vsel %vm615, %v786, %v787
      %789 = vrot.lane.b32.xlu0 %v788, 6
      %v790 = vpop.permute.xlu0 %789
      %v792 = vsel %vm696, %v768, %v785
      %v794 = vsel %vm729, %v792, %v790
      %s795 = scalar_lea.vmem %s1, 8
      %v796 = vld [vmem:[%s795] sm:$0xf]
      %v797 = vld [vmem:[%s795 + $0x4] sm:$0x1]
      %v800 = vunpack.c.l.b16 %v796
      %v801 = vunpack.c.l.b16 %v797
      %v802 = vpack.c.b16 %v801, %v800
      %vm803 = vcmask 72704
      %v804 = vsel %vm803, %v733, 0
      %v806 = vsel %vm803, %v735, 0
      %v808 = vsel %vm803, %v737, 0
      %v810 = vsel %vm803, %v739, 0
      %v812 = vsel %vm803, %v741, 0
      %v814 = vsel %vm803, %v743, 0
      %v816 = vsel %vm803, %v745, 0
      %v818 = vsel %vm803, %v747, 0
      %v820 = vsel %vm803, %v749, 0
      %v822 = vsel %vm803, %v751, 0
      %v824 = vsel %vm803, %v753, 0
      %v826 = vsel %vm803, %v755, 0
      %v828 = vsel %vm803, %v757, 0
      %v830 = vsel %vm803, %v759, 0
      %v832 = vsel %vm803, %v761, 0
      %v834 = vsel %vm803, %v794, 0
      %vm836 = vcmask 1043456
      %vm837 = vcmask 1044480
      %v838 = vsel %vm836, 4294967295, 65535
      %v839 = vsel %vm837, %v838, 0
      %v841 = vand.u32 %v802, %v839
      %843 = vmatpush.bf16.msra.mxu0 0
      %844 = vmatpush.bf16.msra.mxu0 0
      %845 = vmatpush.bf16.msra.mxu0 0
      %846 = vmatpush.bf16.msra.mxu0 0
      %847 = vmatpush.bf16.msra.mxu0 0
      %848 = vmatpush.bf16.msra.mxu0 0
      %849 = vmatpush.bf16.msra.mxu0 0
      %850 = vmatpush.bf16.msra.mxu0 %v841
      %851 = vmatmul.bf16.gmra.mxu0 %v804
      %v852 = vpop.f32.mrf.mxu0
      %v853 = vadd.f32 0.0, %v852
      %v854 = vpop.f32.mrf.mxu0
      %v855 = vadd.f32 0.0, %v854
      %856 = vmatmul.bf16.gmra.mxu0 %v806
      %v857 = vpop.f32.mrf.mxu0
      %v858 = vadd.f32 0.0, %v857
      %v859 = vpop.f32.mrf.mxu0
      %v860 = vadd.f32 0.0, %v859
      %861 = vmatmul.bf16.gmra.mxu0 %v808
      %v862 = vpop.f32.mrf.mxu0
      %v863 = vadd.f32 0.0, %v862
      %v864 = vpop.f32.mrf.mxu0
      %v865 = vadd.f32 0.0, %v864
      %866 = vmatmul.bf16.gmra.mxu0 %v810
      %v867 = vpop.f32.mrf.mxu0
      %v868 = vadd.f32 0.0, %v867
      %v869 = vpop.f32.mrf.mxu0
      %v870 = vadd.f32 0.0, %v869
      %871 = vmatmul.bf16.gmra.mxu0 %v812
      %v872 = vpop.f32.mrf.mxu0
      %v873 = vadd.f32 0.0, %v872
      %v874 = vpop.f32.mrf.mxu0
      %v875 = vadd.f32 0.0, %v874
      %876 = vmatmul.bf16.gmra.mxu0 %v814
      %v877 = vpop.f32.mrf.mxu0
      %v878 = vadd.f32 0.0, %v877
      %v879 = vpop.f32.mrf.mxu0
      %v880 = vadd.f32 0.0, %v879
      %881 = vmatmul.bf16.gmra.mxu0 %v816
      %v882 = vpop.f32.mrf.mxu0
      %v883 = vadd.f32 0.0, %v882
      %v884 = vpop.f32.mrf.mxu0
      %v885 = vadd.f32 0.0, %v884
      %886 = vmatmul.bf16.gmra.mxu0 %v818
      %v887 = vpop.f32.mrf.mxu0
      %v888 = vadd.f32 0.0, %v887
      %v889 = vpop.f32.mrf.mxu0
      %v890 = vadd.f32 0.0, %v889
      %891 = vmatmul.bf16.gmra.mxu0 %v820
      %v892 = vpop.f32.mrf.mxu0
      %v893 = vadd.f32 0.0, %v892
      %v894 = vpop.f32.mrf.mxu0
      %v895 = vadd.f32 0.0, %v894
      %896 = vmatmul.bf16.gmra.mxu0 %v822
      %v897 = vpop.f32.mrf.mxu0
      %v898 = vadd.f32 0.0, %v897
      %v899 = vpop.f32.mrf.mxu0
      %v900 = vadd.f32 0.0, %v899
      %901 = vmatmul.bf16.gmra.mxu0 %v824
      %v902 = vpop.f32.mrf.mxu0
      %v903 = vadd.f32 0.0, %v902
      %v904 = vpop.f32.mrf.mxu0
      %v905 = vadd.f32 0.0, %v904
      %906 = vmatmul.bf16.gmra.mxu0 %v826
      %v907 = vpop.f32.mrf.mxu0
      %v908 = vadd.f32 0.0, %v907
      %v909 = vpop.f32.mrf.mxu0
      %v910 = vadd.f32 0.0, %v909
      %911 = vmatmul.bf16.gmra.mxu0 %v828
      %v912 = vpop.f32.mrf.mxu0
      %v913 = vadd.f32 0.0, %v912
      %v914 = vpop.f32.mrf.mxu0
      %v915 = vadd.f32 0.0, %v914
      %916 = vmatmul.bf16.gmra.mxu0 %v830
      %v917 = vpop.f32.mrf.mxu0
      %v918 = vadd.f32 0.0, %v917
      %v919 = vpop.f32.mrf.mxu0
      %v920 = vadd.f32 0.0, %v919
      %921 = vmatmul.bf16.gmra.mxu0 %v832
      %v922 = vpop.f32.mrf.mxu0
      %v923 = vadd.f32 0.0, %v922
      %v924 = vpop.f32.mrf.mxu0
      %v925 = vadd.f32 0.0, %v924
      %926 = vmatmul.bf16.gmra.mxu0 %v834
      %v927 = vpop.f32.mrf.mxu0
      %v928 = vadd.f32 0.0, %v927
      %v929 = vpop.f32.mrf.mxu0
      %v930 = vadd.f32 0.0, %v929
      %931 = vdwg.mxu0
      %v934 = vunpack.c.l.b16 %v762
      %v935 = vunpack.c.l.b16 %v763
      %v936 = vpack.c.b16 %v935, %v934
      %v937 = vsel %vm803, %v731, 0
      %v940 = vand.u32 %v936, %v839
      %942 = vmatpush.bf16.msra.mxu0 0
      %943 = vmatpush.bf16.msra.mxu0 0
      %944 = vmatpush.bf16.msra.mxu0 0
      %945 = vmatpush.bf16.msra.mxu0 0
      %946 = vmatpush.bf16.msra.mxu0 0
      %947 = vmatpush.bf16.msra.mxu0 0
      %948 = vmatpush.bf16.msra.mxu0 0
      %949 = vmatpush.bf16.msra.mxu0 %v940
      %950 = vmatmul.bf16.gmra.mxu0 %v937
      %v951 = vpop.f32.mrf.mxu0
      %v952 = vadd.f32 %v853, %v951
      %v953 = vpop.f32.mrf.mxu0
      %v954 = vadd.f32 %v855, %v953
      %955 = vmatmul.bf16.gmra.mxu0 %v804
      %v956 = vpop.f32.mrf.mxu0
      %v957 = vadd.f32 %v858, %v956
      %v958 = vpop.f32.mrf.mxu0
      %v959 = vadd.f32 %v860, %v958
      %960 = vmatmul.bf16.gmra.mxu0 %v806
      %v961 = vpop.f32.mrf.mxu0
      %v962 = vadd.f32 %v863, %v961
      %v963 = vpop.f32.mrf.mxu0
      %v964 = vadd.f32 %v865, %v963
      %965 = vmatmul.bf16.gmra.mxu0 %v808
      %v966 = vpop.f32.mrf.mxu0
      %v967 = vadd.f32 %v868, %v966
      %v968 = vpop.f32.mrf.mxu0
      %v969 = vadd.f32 %v870, %v968
      %970 = vmatmul.bf16.gmra.mxu0 %v810
      %v971 = vpop.f32.mrf.mxu0
      %v972 = vadd.f32 %v873, %v971
      %v973 = vpop.f32.mrf.mxu0
      %v974 = vadd.f32 %v875, %v973
      %975 = vmatmul.bf16.gmra.mxu0 %v812
      %v976 = vpop.f32.mrf.mxu0
      %v977 = vadd.f32 %v878, %v976
      %v978 = vpop.f32.mrf.mxu0
      %v979 = vadd.f32 %v880, %v978
      %980 = vmatmul.bf16.gmra.mxu0 %v814
      %v981 = vpop.f32.mrf.mxu0
      %v982 = vadd.f32 %v883, %v981
      %v983 = vpop.f32.mrf.mxu0
      %v984 = vadd.f32 %v885, %v983
      %985 = vmatmul.bf16.gmra.mxu0 %v816
      %v986 = vpop.f32.mrf.mxu0
      %v987 = vadd.f32 %v888, %v986
      %v988 = vpop.f32.mrf.mxu0
      %v989 = vadd.f32 %v890, %v988
      %990 = vmatmul.bf16.gmra.mxu0 %v818
      %v991 = vpop.f32.mrf.mxu0
      %v992 = vadd.f32 %v893, %v991
      %v993 = vpop.f32.mrf.mxu0
      %v994 = vadd.f32 %v895, %v993
      %995 = vmatmul.bf16.gmra.mxu0 %v820
      %v996 = vpop.f32.mrf.mxu0
      %v997 = vadd.f32 %v898, %v996
      %v998 = vpop.f32.mrf.mxu0
      %v999 = vadd.f32 %v900, %v998
      %1000 = vmatmul.bf16.gmra.mxu0 %v822
      %v1001 = vpop.f32.mrf.mxu0
      %v1002 = vadd.f32 %v903, %v1001
      %v1003 = vpop.f32.mrf.mxu0
      %v1004 = vadd.f32 %v905, %v1003
      %1005 = vmatmul.bf16.gmra.mxu0 %v824
      %v1006 = vpop.f32.mrf.mxu0
      %v1007 = vadd.f32 %v908, %v1006
      %v1008 = vpop.f32.mrf.mxu0
      %v1009 = vadd.f32 %v910, %v1008
      %1010 = vmatmul.bf16.gmra.mxu0 %v826
      %v1011 = vpop.f32.mrf.mxu0
      %v1012 = vadd.f32 %v913, %v1011
      %v1013 = vpop.f32.mrf.mxu0
      %v1014 = vadd.f32 %v915, %v1013
      %1015 = vmatmul.bf16.gmra.mxu0 %v828
      %v1016 = vpop.f32.mrf.mxu0
      %v1017 = vadd.f32 %v918, %v1016
      %v1018 = vpop.f32.mrf.mxu0
      %v1019 = vadd.f32 %v920, %v1018
      %1020 = vmatmul.bf16.gmra.mxu0 %v830
      %v1021 = vpop.f32.mrf.mxu0
      %v1022 = vadd.f32 %v923, %v1021
      %v1023 = vpop.f32.mrf.mxu0
      %v1024 = vadd.f32 %v925, %v1023
      %1025 = vmatmul.bf16.gmra.mxu0 %v832
      %v1026 = vpop.f32.mrf.mxu0
      %v1027 = vadd.f32 %v928, %v1026
      %v1028 = vpop.f32.mrf.mxu0
      %v1029 = vadd.f32 %v930, %v1028
      %1030 = vdwg.mxu0
      %v1033 = vunpack.c.l.b16 %v259
      %v1034 = vunpack.c.l.b16 %v260
      %v1035 = vpack.c.b16 %v1034, %v1033
      %v1037 = vunpack.c.l.b16 %v261
      %v1038 = vpack.c.b16 %v1037, %v1037
      %v1040 = vshrl.u32 %v1035, 16
      %v1042 = vshll.u32 %v1035, 16
      %v1044 = vrot.slane %v1042, 1
      %v1045 = vor.u32 %v1040, %v1044
      %v1047 = vshll.u32 %v1038, 16
      %v1049 = vrot.slane %v1047, 1
      %v1050 = vsel %vm390, %v1045, %v1049
      %1051 = vrot.lane.b32.xlu0 %v1050, 3
      %v1052 = vpop.permute.xlu0 %1051
      %v1053 = vrot.slane %v1035, 1
      %v1054 = vrot.slane %v1038, 1
      %v1055 = vsel %vm615, %v1053, %v1054
      %1056 = vrot.lane.b32.xlu0 %v1055, 6
      %v1057 = vpop.permute.xlu0 %1056
      %v1059 = vsel %vm696, %v1035, %v1052
      %v1061 = vsel %vm729, %v1059, %v1057
      %s1062 = scalar_lea.vmem %s1, 16
      %v1063 = vld [vmem:[%s1062] sm:$0xf]
      %v1064 = vld [vmem:[%s1062 + $0x4] sm:$0x1]
      %v1067 = vunpack.c.l.b16 %v1063
      %v1068 = vunpack.c.l.b16 %v1064
      %v1069 = vpack.c.b16 %v1068, %v1067
      %v1070 = vsel %vm803, %v1061, 0
      %v1073 = vand.u32 %v1069, %v839
      %1075 = vmatpush.bf16.msra.mxu0 0
      %1076 = vmatpush.bf16.msra.mxu0 0
      %1077 = vmatpush.bf16.msra.mxu0 0
      %1078 = vmatpush.bf16.msra.mxu0 0
      %1079 = vmatpush.bf16.msra.mxu0 0
      %1080 = vmatpush.bf16.msra.mxu0 0
      %1081 = vmatpush.bf16.msra.mxu0 0
      %1082 = vmatpush.bf16.msra.mxu0 %v1073
      %1083 = vmatmul.bf16.gmra.mxu0 %v806
      %v1084 = vpop.f32.mrf.mxu0
      %v1085 = vadd.f32 0.0, %v1084
      %v1086 = vpop.f32.mrf.mxu0
      %v1087 = vadd.f32 0.0, %v1086
      %1088 = vmatmul.bf16.gmra.mxu0 %v808
      %v1089 = vpop.f32.mrf.mxu0
      %v1090 = vadd.f32 0.0, %v1089
      %v1091 = vpop.f32.mrf.mxu0
      %v1092 = vadd.f32 0.0, %v1091
      %1093 = vmatmul.bf16.gmra.mxu0 %v810
      %v1094 = vpop.f32.mrf.mxu0
      %v1095 = vadd.f32 0.0, %v1094
      %v1096 = vpop.f32.mrf.mxu0
      %v1097 = vadd.f32 0.0, %v1096
      %1098 = vmatmul.bf16.gmra.mxu0 %v812
      %v1099 = vpop.f32.mrf.mxu0
      %v1100 = vadd.f32 0.0, %v1099
      %v1101 = vpop.f32.mrf.mxu0
      %v1102 = vadd.f32 0.0, %v1101
      %1103 = vmatmul.bf16.gmra.mxu0 %v814
      %v1104 = vpop.f32.mrf.mxu0
      %v1105 = vadd.f32 0.0, %v1104
      %v1106 = vpop.f32.mrf.mxu0
      %v1107 = vadd.f32 0.0, %v1106
      %1108 = vmatmul.bf16.gmra.mxu0 %v816
      %v1109 = vpop.f32.mrf.mxu0
      %v1110 = vadd.f32 0.0, %v1109
      %v1111 = vpop.f32.mrf.mxu0
      %v1112 = vadd.f32 0.0, %v1111
      %1113 = vmatmul.bf16.gmra.mxu0 %v818
      %v1114 = vpop.f32.mrf.mxu0
      %v1115 = vadd.f32 0.0, %v1114
      %v1116 = vpop.f32.mrf.mxu0
      %v1117 = vadd.f32 0.0, %v1116
      %1118 = vmatmul.bf16.gmra.mxu0 %v820
      %v1119 = vpop.f32.mrf.mxu0
      %v1120 = vadd.f32 0.0, %v1119
      %v1121 = vpop.f32.mrf.mxu0
      %v1122 = vadd.f32 0.0, %v1121
      %1123 = vmatmul.bf16.gmra.mxu0 %v822
      %v1124 = vpop.f32.mrf.mxu0
      %v1125 = vadd.f32 0.0, %v1124
      %v1126 = vpop.f32.mrf.mxu0
      %v1127 = vadd.f32 0.0, %v1126
      %1128 = vmatmul.bf16.gmra.mxu0 %v824
      %v1129 = vpop.f32.mrf.mxu0
      %v1130 = vadd.f32 0.0, %v1129
      %v1131 = vpop.f32.mrf.mxu0
      %v1132 = vadd.f32 0.0, %v1131
      %1133 = vmatmul.bf16.gmra.mxu0 %v826
      %v1134 = vpop.f32.mrf.mxu0
      %v1135 = vadd.f32 0.0, %v1134
      %v1136 = vpop.f32.mrf.mxu0
      %v1137 = vadd.f32 0.0, %v1136
      %1138 = vmatmul.bf16.gmra.mxu0 %v828
      %v1139 = vpop.f32.mrf.mxu0
      %v1140 = vadd.f32 0.0, %v1139
      %v1141 = vpop.f32.mrf.mxu0
      %v1142 = vadd.f32 0.0, %v1141
      %1143 = vmatmul.bf16.gmra.mxu0 %v830
      %v1144 = vpop.f32.mrf.mxu0
      %v1145 = vadd.f32 0.0, %v1144
      %v1146 = vpop.f32.mrf.mxu0
      %v1147 = vadd.f32 0.0, %v1146
      %1148 = vmatmul.bf16.gmra.mxu0 %v832
      %v1149 = vpop.f32.mrf.mxu0
      %v1150 = vadd.f32 0.0, %v1149
      %v1151 = vpop.f32.mrf.mxu0
      %v1152 = vadd.f32 0.0, %v1151
      %1153 = vmatmul.bf16.gmra.mxu0 %v834
      %v1154 = vpop.f32.mrf.mxu0
      %v1155 = vadd.f32 0.0, %v1154
      %v1156 = vpop.f32.mrf.mxu0
      %v1157 = vadd.f32 0.0, %v1156
      %1158 = vmatmul.bf16.gmra.mxu0 %v1070
      %v1159 = vpop.f32.mrf.mxu0
      %v1160 = vadd.f32 0.0, %v1159
      %v1161 = vpop.f32.mrf.mxu0
      %v1162 = vadd.f32 0.0, %v1161
      %1163 = vdwg.mxu0
      %v1164 = vadd.f32 %v952, %v1085
      %v1165 = vadd.f32 %v954, %v1087
      %v1166 = vadd.f32 %v957, %v1090
      %v1167 = vadd.f32 %v959, %v1092
      %v1168 = vadd.f32 %v962, %v1095
      %v1169 = vadd.f32 %v964, %v1097
      %v1170 = vadd.f32 %v967, %v1100
      %v1171 = vadd.f32 %v969, %v1102
      %v1172 = vadd.f32 %v972, %v1105
      %v1173 = vadd.f32 %v974, %v1107
      %v1174 = vadd.f32 %v977, %v1110
      %v1175 = vadd.f32 %v979, %v1112
      %v1176 = vadd.f32 %v982, %v1115
      %v1177 = vadd.f32 %v984, %v1117
      %v1178 = vadd.f32 %v987, %v1120
      %v1179 = vadd.f32 %v989, %v1122
      %v1180 = vadd.f32 %v992, %v1125
      %v1181 = vadd.f32 %v994, %v1127
      %v1182 = vadd.f32 %v997, %v1130
      %v1183 = vadd.f32 %v999, %v1132
      %v1184 = vadd.f32 %v1002, %v1135
      %v1185 = vadd.f32 %v1004, %v1137
      %v1186 = vadd.f32 %v1007, %v1140
      %v1187 = vadd.f32 %v1009, %v1142
      %v1188 = vadd.f32 %v1012, %v1145
      %v1189 = vadd.f32 %v1014, %v1147
      %v1190 = vadd.f32 %v1017, %v1150
      %v1191 = vadd.f32 %v1019, %v1152
      %v1192 = vadd.f32 %v1022, %v1155
      %v1193 = vadd.f32 %v1024, %v1157
      %v1194 = vadd.f32 %v1027, %v1160
      %v1195 = vadd.f32 %v1029, %v1162
      %v1196 = vld [vmem:[%s2] sm:$0x1]
      %v1198 = vperm.slane %v1196, 0
      %v1200 = vadd.f32 %v1164, %v1198
      %v1201 = vadd.f32 %v1165, %v1198
      %v1202 = vadd.f32 %v1166, %v1198
      %v1203 = vadd.f32 %v1167, %v1198
      %v1204 = vadd.f32 %v1168, %v1198
      %v1205 = vadd.f32 %v1169, %v1198
      %v1206 = vadd.f32 %v1170, %v1198
      %v1207 = vadd.f32 %v1171, %v1198
      %v1208 = vadd.f32 %v1172, %v1198
      %v1209 = vadd.f32 %v1173, %v1198
      %v1210 = vadd.f32 %v1174, %v1198
      %v1211 = vadd.f32 %v1175, %v1198
      %v1212 = vadd.f32 %v1176, %v1198
      %v1213 = vadd.f32 %v1177, %v1198
      %v1214 = vadd.f32 %v1178, %v1198
      %v1215 = vadd.f32 %v1179, %v1198
      %v1216 = vadd.f32 %v1180, %v1198
      %v1217 = vadd.f32 %v1181, %v1198
      %v1218 = vadd.f32 %v1182, %v1198
      %v1219 = vadd.f32 %v1183, %v1198
      %v1220 = vadd.f32 %v1184, %v1198
      %v1221 = vadd.f32 %v1185, %v1198
      %v1222 = vadd.f32 %v1186, %v1198
      %v1223 = vadd.f32 %v1187, %v1198
      %v1224 = vadd.f32 %v1188, %v1198
      %v1225 = vadd.f32 %v1189, %v1198
      %v1226 = vadd.f32 %v1190, %v1198
      %v1227 = vadd.f32 %v1191, %v1198
      %v1228 = vadd.f32 %v1192, %v1198
      %v1229 = vadd.f32 %v1193, %v1198
      %v1230 = vadd.f32 %v1194, %v1198
      %v1231 = vadd.f32 %v1195, %v1198
      %v1232 = vmax.f32 %v1200, 0.0
      %v1233 = vmax.f32 %v1201, 0.0
      %v1234 = vmax.f32 %v1202, 0.0
      %v1235 = vmax.f32 %v1203, 0.0
      %v1236 = vmax.f32 %v1204, 0.0
      %v1237 = vmax.f32 %v1205, 0.0
      %v1238 = vmax.f32 %v1206, 0.0
      %v1239 = vmax.f32 %v1207, 0.0
      %v1240 = vmax.f32 %v1208, 0.0
      %v1241 = vmax.f32 %v1209, 0.0
      %v1242 = vmax.f32 %v1210, 0.0
      %v1243 = vmax.f32 %v1211, 0.0
      %v1244 = vmax.f32 %v1212, 0.0
      %v1245 = vmax.f32 %v1213, 0.0
      %v1246 = vmax.f32 %v1214, 0.0
      %v1247 = vmax.f32 %v1215, 0.0
      %v1248 = vmax.f32 %v1216, 0.0
      %v1249 = vmax.f32 %v1217, 0.0
      %v1250 = vmax.f32 %v1218, 0.0
      %v1251 = vmax.f32 %v1219, 0.0
      %v1252 = vmax.f32 %v1220, 0.0
      %v1253 = vmax.f32 %v1221, 0.0
      %v1254 = vmax.f32 %v1222, 0.0
      %v1255 = vmax.f32 %v1223, 0.0
      %v1256 = vmax.f32 %v1224, 0.0
      %v1257 = vmax.f32 %v1225, 0.0
      %v1258 = vmax.f32 %v1226, 0.0
      %v1259 = vmax.f32 %v1227, 0.0
      %v1260 = vmax.f32 %v1228, 0.0
      %v1261 = vmax.f32 %v1229, 0.0
      %v1262 = vmax.f32 %v1230, 0.0
      %v1263 = vmax.f32 %v1231, 0.0
      %v1264 = vpack.c.bf16 %v1232, %v1232
      %v1265 = vpack.c.bf16 %v1233, %v1233
      %v1266 = vpack.c.bf16 %v1234, %v1234
      %v1267 = vpack.c.bf16 %v1235, %v1235
      %v1268 = vpack.c.bf16 %v1236, %v1236
      %v1269 = vpack.c.bf16 %v1237, %v1237
      %v1270 = vpack.c.bf16 %v1238, %v1238
      %v1271 = vpack.c.bf16 %v1239, %v1239
      %v1272 = vpack.c.bf16 %v1240, %v1240
      %v1273 = vpack.c.bf16 %v1241, %v1241
      %v1274 = vpack.c.bf16 %v1242, %v1242
      %v1275 = vpack.c.bf16 %v1243, %v1243
      %v1276 = vpack.c.bf16 %v1244, %v1244
      %v1277 = vpack.c.bf16 %v1245, %v1245
      %v1278 = vpack.c.bf16 %v1246, %v1246
      %v1279 = vpack.c.bf16 %v1247, %v1247
      %v1280 = vpack.c.bf16 %v1248, %v1248
      %v1281 = vpack.c.bf16 %v1249, %v1249
      %v1282 = vpack.c.bf16 %v1250, %v1250
      %v1283 = vpack.c.bf16 %v1251, %v1251
      %v1284 = vpack.c.bf16 %v1252, %v1252
      %v1285 = vpack.c.bf16 %v1253, %v1253
      %v1286 = vpack.c.bf16 %v1254, %v1254
      %v1287 = vpack.c.bf16 %v1255, %v1255
      %v1288 = vpack.c.bf16 %v1256, %v1256
      %v1289 = vpack.c.bf16 %v1257, %v1257
      %v1290 = vpack.c.bf16 %v1258, %v1258
      %v1291 = vpack.c.bf16 %v1259, %v1259
      %v1292 = vpack.c.bf16 %v1260, %v1260
      %v1293 = vpack.c.bf16 %v1261, %v1261
      %v1294 = vpack.c.bf16 %v1262, %v1262
      %v1295 = vpack.c.bf16 %v1263, %v1263
      %vm1296 = vcmask 60416
      %1297 = vst.msk [vmem:[%s206] sm:$0xf] %vm1296, %v1264
      %1298 = vst.msk [vmem:[%s206 + $0x4] sm:$0xf] %vm1296, %v1265
      %1299 = vst.msk [vmem:[%s206 + $0x8] sm:$0xf] %vm1296, %v1266
      %1300 = vst.msk [vmem:[%s206 + $0xc] sm:$0xf] %vm1296, %v1267
      %1301 = vst.msk [vmem:[%s206 + $0x10] sm:$0xf] %vm1296, %v1268
      %1302 = vst.msk [vmem:[%s206 + $0x14] sm:$0xf] %vm1296, %v1269
      %1303 = vst.msk [vmem:[%s206 + $0x18] sm:$0xf] %vm1296, %v1270
      %1304 = vst.msk [vmem:[%s206 + $0x1c] sm:$0xf] %vm1296, %v1271
      %1305 = vst.msk [vmem:[%s206 + $0x20] sm:$0xf] %vm1296, %v1272
      %1306 = vst.msk [vmem:[%s206 + $0x24] sm:$0xf] %vm1296, %v1273
      %1307 = vst.msk [vmem:[%s206 + $0x28] sm:$0xf] %vm1296, %v1274
      %1308 = vst.msk [vmem:[%s206 + $0x2c] sm:$0xf] %vm1296, %v1275
      %1309 = vst.msk [vmem:[%s206 + $0x30] sm:$0xf] %vm1296, %v1276
      %1310 = vst.msk [vmem:[%s206 + $0x34] sm:$0xf] %vm1296, %v1277
      %1311 = vst.msk [vmem:[%s206 + $0x38] sm:$0xf] %vm1296, %v1278
      %1312 = vst.msk [vmem:[%s206 + $0x3c] sm:$0xf] %vm1296, %v1279
      %1313 = vst.msk [vmem:[%s206 + $0x40] sm:$0xf] %vm1296, %v1280
      %1314 = vst.msk [vmem:[%s206 + $0x44] sm:$0xf] %vm1296, %v1281
      %1315 = vst.msk [vmem:[%s206 + $0x48] sm:$0xf] %vm1296, %v1282
      %1316 = vst.msk [vmem:[%s206 + $0x4c] sm:$0xf] %vm1296, %v1283
      %1317 = vst.msk [vmem:[%s206 + $0x50] sm:$0xf] %vm1296, %v1284
      %1318 = vst.msk [vmem:[%s206 + $0x54] sm:$0xf] %vm1296, %v1285
      %1319 = vst.msk [vmem:[%s206 + $0x58] sm:$0xf] %vm1296, %v1286
      %1320 = vst.msk [vmem:[%s206 + $0x5c] sm:$0xf] %vm1296, %v1287
      %1321 = vst.msk [vmem:[%s206 + $0x60] sm:$0xf] %vm1296, %v1288
      %1322 = vst.msk [vmem:[%s206 + $0x64] sm:$0xf] %vm1296, %v1289
      %1323 = vst.msk [vmem:[%s206 + $0x68] sm:$0xf] %vm1296, %v1290
      %1324 = vst.msk [vmem:[%s206 + $0x6c] sm:$0xf] %vm1296, %v1291
      %1325 = vst.msk [vmem:[%s206 + $0x70] sm:$0xf] %vm1296, %v1292
      %1326 = vst.msk [vmem:[%s206 + $0x74] sm:$0xf] %vm1296, %v1293
      %1327 = vst.msk [vmem:[%s206 + $0x78] sm:$0xf] %vm1296, %v1294
      %1328 = vst.msk [vmem:[%s206 + $0x7c] sm:$0xf] %vm1296, %v1295
      %p1329 = scmp.lt.s32.totalorder %s18, 3
      %s1330 = scalar_select %p1329, %s18, 3
      %p1331 = scmp.lt.s32.totalorder %s19, 0
      %s1332 = scalar_select %p1331, %s19, 0
      %s1333 = smul.addr %s1332, 32
      %s1334 = smul.addr %s1330, 32
      %s1335 = sadd.s32 %s1333, %s1334
      %s1336 = smul.addr %s1335, 4
      %s1337 = scalar_lea.vmem %s3, %s1336
      // Predicated region
      $region33: #{tpu_custom_call.1} parent=31 // pred_check
        %p1338 = pneg %p116
      $region34: #{tpu_custom_call.1} parent=31 // pred_check_branch
        %1340 = sbr.rel (%p1338) target = $region36
      $region35: #{tpu_custom_call.1} parent=31 // pred_region
        _
      $region36: #{tpu_custom_call.1} parent=31 // pred_fallthru
        _
    $region32: #{tpu_custom_call.1} parent=5 // pred_fallthru
      _
    %p1341 = scmp.le.s32.totalorder 2, %s9
    // Predicated region
    $region37: #{tpu_custom_call.1} parent=5 // pred_check
      %p1342 = pneg %p1341
    $region38: #{tpu_custom_call.1} parent=5 // pred_check_branch
      %1344 = sbr.rel (%p1342) target = $region40
    $region39: #{tpu_custom_call.1} parent=5 // pred_region
      %s1345 = ssub.s32 %s9, 2
      // Predicated region
      $region41: #{tpu_custom_call.1} parent=39 // pred_check
        %p1346 = pneg %p122
      $region42: #{tpu_custom_call.1} parent=39 // pred_check_branch
        %1348 = sbr.rel (%p1346) target = $region44
      $region43: #{tpu_custom_call.1} parent=39 // pred_region
        %p1349 = scmp.lt.s32.totalorder %s20, 3
        %s1350 = scalar_select %p1349, %s20, 3
        %p1351 = scmp.lt.s32.totalorder %s21, 0
        %s1352 = scalar_select %p1351, %s21, 0
        %s1353 = smul.addr %s1352, 32
        %s1354 = smul.addr %s1350, 32
        %s1355 = sadd.s32 %s1353, %s1354
        %s1356 = smul.addr %s1355, 4
        %s1357 = scalar_lea.vmem %s3, %s1356
      $region44: #{tpu_custom_call.1} parent=39 // pred_fallthru
        _
    $region40: #{tpu_custom_call.1} parent=5 // pred_fallthru
      _
  $region6: #{tpu_custom_call.1} parent=0 // loop_footer
    %s13 = sadd.s32 1, %s9
  $region7: #{tpu_custom_call.1} parent=0 // loop_footer_branch
    %8 = sbr.rel target = $region3
  $region8: #{tpu_custom_call.1} parent=0 // loop_exit
    _

</llo_original>
